<compile_context>
chip_gen: v7x
topology: tpu7x:2x2x1
jax: 0.10.0
libtpu: 0.0.40
codegen_flags: <defaults>
</compile_context>

<pallas_src>
import jax
import jax.numpy as jnp
from jax.experimental import pallas as pl
from jax.experimental.pallas import tpu as pltpu


_LANE = 512      # preferred lane-dense width (multiple of 128 -> unmasked vst)
_TILE_R = 1024   # 1024 x 512 f32 = 2 MiB per buffer


def _quantizer_kernel(delta_ref, x_ref, o_ref):
    # delta_ref: SMEM (1,) float32; x_ref/o_ref: (tile_r, lane) VMEM tiles.
    d = delta_ref[0]
    x = x_ref[...].astype(jnp.float32)
    # Exact divide: compute hides fully under the HBM-bound DMA, and it avoids
    # the 1-step floor flips that x * (1/delta) can produce at bin boundaries.
    encoded = jnp.floor(x / d)
    o_ref[...] = (d * (encoded + 0.5)).astype(o_ref.dtype)


def _run_kernel_2d(x2d, delta_f32):
    rows, lane = x2d.shape
    itemsize = jnp.dtype(x2d.dtype).itemsize
    # Sublane packing multiple for the dtype: f32 -> 8, bf16 -> 16, int8/fp8 -> 32.
    sublane = 8 * max(1, 4 // itemsize)

    if rows < 2 * sublane:
        # Tiny input: one full-array block (block dims == array dims is legal).
        tile_r = rows
    else:
        # Target ~8 grid steps so double-buffering has depth and the "parallel"
        # axis can shard across v7x's two TensorCores; cap per-buffer size.
        target = pl.cdiv(rows, 8)
        tile_r = min(_TILE_R, ((target + sublane - 1) // sublane) * sublane)
    grid = (pl.cdiv(rows, tile_r),)   # ragged last block is masked by Pallas

    return pl.pallas_call(
        _quantizer_kernel,
        out_shape=jax.ShapeDtypeStruct(x2d.shape, x2d.dtype),
        grid=grid,
        in_specs=[
            pl.BlockSpec(memory_space=pltpu.SMEM),            # [delta] (f32)
            pl.BlockSpec((tile_r, lane), lambda i: (i, 0)),   # x tile
        ],
        out_specs=pl.BlockSpec((tile_r, lane), lambda i: (i, 0)),
        compiler_params=pltpu.CompilerParams(
            dimension_semantics=("parallel",)),
        cost_estimate=pl.CostEstimate(
            flops=4 * x2d.size,
            transcendentals=0,
            bytes_accessed=2 * x2d.size * itemsize),
    )(delta_f32, x2d)


def quantizer_forward(x, delta):
    """x: float array of any shape (e.g. NCHW). delta: scalar parameter."""
    orig_shape = x.shape
    dtype = x.dtype
    total = x.size

    delta_f32 = jnp.asarray(delta, jnp.float32).reshape((1,))
    x_flat = x.reshape(-1)  # zero-copy for a contiguous input

    # Widest lane-dense width that divides the element count -> zero-copy reshape,
    # no padding, no trailing slice.
    lane = next((l for l in (_LANE, 256, 128) if total % l == 0), None)
    if lane is not None:
        out2d = _run_kernel_2d(x_flat.reshape(total // lane, lane), delta_f32)
        return out2d.reshape(orig_shape)

    # Ragged case: run the 128-aligned prefix through the kernel and the short
    # (<128 element) tail through plain jnp; never pad/re-slice the full tensor.
    main_n = (total // 128) * 128
    d32 = delta_f32[0]
    tail32 = x_flat[main_n:].astype(jnp.float32)
    tail_out = (d32 * (jnp.floor(tail32 / d32) + 0.5)).astype(dtype)
    if main_n == 0:
        return tail_out.reshape(orig_shape)
    main_lane = next(l for l in (_LANE, 256, 128) if main_n % l == 0)
    main_out = _run_kernel_2d(
        x_flat[:main_n].reshape(main_n // main_lane, main_lane), delta_f32)
    return jnp.concatenate([main_out.reshape(-1), tail_out]).reshape(orig_shape)


def quantizer_reference(x, delta):
    return delta * (jnp.floor(x / delta) + 0.5)


if __name__ == "__main__":
    key = jax.random.PRNGKey(0)
    # NCHW input, same convention as the PyTorch module.
    x = jax.random.normal(key, (2, 4, 16, 16), dtype=jnp.float32) * 3.0

    # Deterministic parameter init, matching nn.Parameter(torch.tensor(1.0)).
    delta = jnp.float32(1.0)

    # TODO(synk): the custom Floor.backward (zeroed straight-through gradient) is
    # training-only autograd behavior; only the forward pass is implemented here.
    out = quantizer_forward(x, delta)
    out = jax.block_until_ready(out)

    ref = quantizer_reference(x, delta)
    assert out.shape == x.shape and out.dtype == x.dtype
    assert jnp.allclose(out, ref, atol=1e-6, rtol=1e-6)

    print("KERNEL_OK")
</pallas_src>

<mosaic_0001>
module attributes {stable_mosaic.version = 11 : i64} {
  func.func @_quantizer_kernel(%arg0: i32, %arg1: memref<1xf32, #tpu.memory_space<smem>>, %arg2: memref<4x512xf32, #tpu.memory_space<vmem>>, %arg3: memref<4x512xf32, #tpu.memory_space<vmem>>) attributes {dimension_semantics = [#tpu.dimension_semantics<parallel>], iteration_bounds = array<i64: 1>, scalar_prefetch = 0 : i64, scratch_operands = 0 : i64, tpu.core_type = #tpu.core_type<tc>, window_params = [{transform_indices = @transform_0, window_bounds = array<i64: 1>}, {transform_indices = @transform_1, window_bounds = array<i64: 4, 512>}, {transform_indices = @transform_2, window_bounds = array<i64: 4, 512>}]} {
    %c0 = arith.constant 0 : index
    %0 = memref.load %arg1[%c0] : memref<1xf32, #tpu.memory_space<smem>>
    %c0_0 = arith.constant 0 : index
    %c0_1 = arith.constant 0 : index
    %1 = vector.load %arg2[%c0_0, %c0_1] : memref<4x512xf32, #tpu.memory_space<vmem>>, vector<4x512xf32>
    %2 = vector.broadcast %0 : f32 to vector<4x512xf32>
    %3 = arith.divf %1, %2 : vector<4x512xf32>
    %4 = math.floor %3 : vector<4x512xf32>
    %cst = arith.constant 5.000000e-01 : f32
    %5 = vector.broadcast %cst : f32 to vector<4x512xf32>
    %6 = arith.addf %4, %5 : vector<4x512xf32>
    %7 = vector.broadcast %0 : f32 to vector<4x512xf32>
    %8 = arith.mulf %7, %6 : vector<4x512xf32>
    %c0_2 = arith.constant 0 : index
    %c0_3 = arith.constant 0 : index
    %9 = vector.load %arg3[%c0_2, %c0_3] : memref<4x512xf32, #tpu.memory_space<vmem>>, vector<4x512xf32>
    tpu.vector_store %arg3[%c0_2, %c0_3], %8 {strides = array<i32>} : memref<4x512xf32, #tpu.memory_space<vmem>>, vector<4x512xf32>,
    return
  }
  func.func @transform_0(%arg0: i32) -> i32 {
    %c0_i32 = arith.constant 0 : i32
    %c0_i32_0 = arith.constant 0 : i32
    return %c0_i32 : i32
  }
  func.func @transform_1(%arg0: i32) -> (i32, i32) {
    %c0_i32 = arith.constant 0 : i32
    %c0_i32_0 = arith.constant 0 : i32
    return %arg0, %c0_i32 : i32, i32
  }
  func.func @transform_2(%arg0: i32) -> (i32, i32) {
    %c0_i32 = arith.constant 0 : i32
    %c0_i32_0 = arith.constant 0 : i32
    return %arg0, %c0_i32 : i32, i32
  }
}

</mosaic_0001>

<llo_original>
// kernel: tpu_custom_call.1
$region0: #{tpu_custom_call.1}
  #allocation0 [shape = 'u32[]', space=smem, size = 0x4, offset = 0x4, fixed_abs, tag = 'smem constant byte address 0x4 - core index']
  #allocation1 [shape = 'u32[144,128]{1,0:T(1,128)}', space=vmem, size = 0x12000, scoped, tag = 'internal scratch']
  #allocation2 [shape = 'f32[1]{0:T(128)S(6)}', space=smem, size = 0x200, scoped, tag = 'scoped memory for tpu_custom_call.1']
  %s0 = inlined_call_operand.<no memory space> [shape: f32[1], index: 0, kind: input, shape index: {}]
  %s1 = inlined_call_operand.hbm [shape: f32[4,512], index: 1, kind: input, shape index: {}]
  %s2 = inlined_call_operand.hbm [shape: f32[4,512], index: 2, kind: output, shape index: {}]
  %s3 = sld [smem:[#allocation0]]
  $region22: #{tpu_custom_call.1} parent=0
    _
  %s5 = ssub.s32 1, %s3
  %s6 = scalar_select 0, %s5, %s3
  %7 = sst [smem:[#allocation2]] %s0
  $region1: #{tpu_custom_call.1} parent=0
    #allocation3 [shape = 'u8[8192]{0}', space=vmem, size = 0x2000, scoped, tag = 'input window, operand 1, single buffered']
    #allocation4 [shape = 's32[1]{0}', space=sflag, size = 0x4, scoped, tag = 'scoped memory for tpu_custom_call.1']
    #allocation5 [shape = 's32[1]{0}', space=sflag, size = 0x4, scoped, tag = 'scoped memory for tpu_custom_call.1']
    #allocation6 [shape = 'u8[8192]{0}', space=vmem, size = 0x2000, scoped, tag = 'output window, operand 0, single buffered']
    %8 = vsyncpa [#allocation4], 0
    %9 = vsyncpa [#allocation5], 0
    // Predicated region
    $region2: #{tpu_custom_call.1} parent=1 // pred_check
      _
    $region3: #{tpu_custom_call.1} parent=1 // pred_check_branch
      %11 = sbr.rel (0) target = $region5
    $region4: #{tpu_custom_call.1} parent=1 // pred_region
      _
    $region5: #{tpu_custom_call.1} parent=1 // pred_fallthru
      _
    // Predicated region
    $region6: #{tpu_custom_call.1} parent=1 // pred_check
      _
    $region7: #{tpu_custom_call.1} parent=1 // pred_check_branch
      %13 = sbr.rel (0) target = $region9
    $region8: #{tpu_custom_call.1} parent=1 // pred_region
      %s15 = ssub.s32 256, 256
      %16 = vsyncadd [#allocation4], %s15
      %s18 = sshll.u32 [#allocation3], 4
      %s19 = int_to_ptr.vmem [resolvable:$true] %s18
      %21 = dma.hbm_to_vmem [thread:$0]  %s1, 256, %s19, [#allocation4]
    $region9: #{tpu_custom_call.1} parent=1 // pred_fallthru
      _
    // Predicated region
    $region10: #{tpu_custom_call.1} parent=1 // pred_check
      _
    $region11: #{tpu_custom_call.1} parent=1 // pred_check_branch
      %23 = sbr.rel (0) target = $region13
    $region12: #{tpu_custom_call.1} parent=1 // pred_region
      %24 = dma.done [#allocation4], 256
    $region13: #{tpu_custom_call.1} parent=1 // pred_fallthru
      _
    %s25 = sld [smem:[#allocation2]]
    %v26 = vld [vmem:[#allocation3] sm:$0xff]
    %v27 = vld [vmem:[#allocation3 + $0x8] sm:$0xff]
    %v28 = vstv %s25
    %v29 = vrcp.pop %v28
    %v30 = vmul.f32 %v26, %v29
    %v31 = vmul.f32 %v27, %v29
    %v32 = vfloor.f32 %v30
    %v33 = vfloor.f32 %v31
    %v34 = vadd.f32 %v32, 0.5
    %v35 = vadd.f32 %v33, 0.5
    %v36 = vmul.f32 %v28, %v34
    %v37 = vmul.f32 %v28, %v35
    %38 = vst [vmem:[#allocation6] sm:$0xff] %v36
    %39 = vst [vmem:[#allocation6 + $0x8] sm:$0xff] %v37
    // Predicated region
    $region14: #{tpu_custom_call.1} parent=1 // pred_check
      _
    $region15: #{tpu_custom_call.1} parent=1 // pred_check_branch
      %41 = sbr.rel (0) target = $region17
    $region16: #{tpu_custom_call.1} parent=1 // pred_region
      %s43 = ssub.s32 256, 256
      %44 = vsyncadd [#allocation5], %s43
      %s46 = sshll.u32 [#allocation6], 4
      %s47 = int_to_ptr.vmem [resolvable:$true] %s46
      %49 = dma.vmem_to_hbm [thread:$0]  %s47, 256, %s2, [#allocation5]
    $region17: #{tpu_custom_call.1} parent=1 // pred_fallthru
      _
    // Predicated region
    $region18: #{tpu_custom_call.1} parent=1 // pred_check
      _
    $region19: #{tpu_custom_call.1} parent=1 // pred_check_branch
      %51 = sbr.rel (0) target = $region21
    $region20: #{tpu_custom_call.1} parent=1 // pred_region
      %52 = dma.done [#allocation5], 256
    $region21: #{tpu_custom_call.1} parent=1 // pred_fallthru
      _
    %53 = vsyncpa [#allocation4], 1
    %54 = vsyncpa [#allocation5], 1

</llo_original>
